<compile_context>
chip_gen: v7x
topology: tpu7x:2x2x1
jax: 0.10.0
libtpu: 0.0.40
codegen_flags: <defaults>
</compile_context>

<pallas_src>
import jax
import jax.numpy as jnp
from jax.experimental import pallas as pl
from jax.experimental.pallas import tpu as pltpu


# ----------------------------------------------------------------------------
# Small helpers
# ----------------------------------------------------------------------------
def _round_up(x, m):
    return ((x + m - 1) // m) * m


def _pick_tile(dim, target, align):
    """Split `dim` into nk tiles of size tk (multiple of `align`, ~<= target).
    Returns (tk, nk, padded_dim = tk * nk).  Padding is < align * nk elements."""
    nk = max(1, pl.cdiv(dim, target))
    tk = _round_up(pl.cdiv(dim, nk), align)
    return tk, nk, tk * nk


# ----------------------------------------------------------------------------
# Elementwise fusion (sum / mean)
# ----------------------------------------------------------------------------
def _make_elementwise_kernel(scale):
    def kernel(a_ref, b_ref, o_ref):
        s = a_ref[...] + b_ref[...]
        if scale is not None:        # static Python constant -> folded at trace time
            s = s * scale
        o_ref[...] = s
    return kernel


_EW_TILE_ROWS = 512   # 512 x <=512 f32 tile ~ 1 MiB/operand, ~6 MiB double-buffered


def _elementwise_fuse(feat1, feat2, scale):
    assert feat1.shape == feat2.shape and feat1.dtype == feat2.dtype
    shape, total = feat1.shape, feat1.size
    kernel = _make_elementwise_kernel(scale)

    # Lane-dense 2-D view; pick a column count that keeps padding minimal.
    cols = 128
    for c in (512, 256):
        if total % c == 0:
            cols = c
            break
    rows = pl.cdiv(total, cols)
    if rows > _EW_TILE_ROWS:
        tile_r = _EW_TILE_ROWS
        rows = _round_up(rows, tile_r)
    else:
        tile_r = rows                 # single block == full dims (allowed)
    padded = rows * cols

    a = feat1.reshape(-1)
    b = feat2.reshape(-1)
    if padded != total:               # padding an elementwise add is exact
        a = jnp.pad(a, (0, padded - total))
        b = jnp.pad(b, (0, padded - total))
    a = a.reshape(rows, cols)
    b = b.reshape(rows, cols)

    out = pl.pallas_call(
        kernel,
        out_shape=jax.ShapeDtypeStruct((rows, cols), feat1.dtype),
        grid_spec=pltpu.PrefetchScalarGridSpec(
            num_scalar_prefetch=0,
            grid=(rows // tile_r,),
            in_specs=[pl.BlockSpec((tile_r, cols), lambda i: (i, 0)),
                      pl.BlockSpec((tile_r, cols), lambda i: (i, 0))],
            out_specs=pl.BlockSpec((tile_r, cols), lambda i: (i, 0)),
        ),
        compiler_params=pltpu.CompilerParams(
            dimension_semantics=("parallel",)),
    )(a, b)

    out = out.reshape(-1)
    if padded != total:
        out = out[:total]
    return out.reshape(shape)


# ----------------------------------------------------------------------------
# MLP fusion:  y = tanh( relu( [f1|f2] @ W1 + b1 ) @ W2 + b2 )
#
# Kernel 1: stream W1 in large K tiles (reduction grid axis), accumulate the
#           (1, hidden) activation in f32 VMEM scratch, finalize with +b1/ReLU.
# Kernel 2: stream W2 in N tiles ('parallel' grid axis), tiny h stays resident.
# ----------------------------------------------------------------------------
_TK_TARGET = 8192   # ~2 MiB bf16 weight DMA per step (hidden=128) on every chip
_TN_TARGET = 8192


def _mlp_hidden_kernel(x_ref, w1_ref, b1_ref, h_ref, acc_ref):
    k = pl.program_id(0)

    @pl.when(k == 0)
    def _():
        acc_ref[...] = jnp.zeros_like(acc_ref)

    acc_ref[...] += jnp.dot(x_ref[...], w1_ref[...],
                            preferred_element_type=jnp.float32)

    @pl.when(k == pl.num_programs(0) - 1)
    def _():
        h_ref[...] = jnp.maximum(acc_ref[...] + b1_ref[...], 0.0).astype(h_ref.dtype)


def _mlp_out_kernel(h_ref, w2_ref, b2_ref, o_ref):
    y = jnp.dot(h_ref[...], w2_ref[...], preferred_element_type=jnp.float32)
    o_ref[...] = jnp.tanh(y + b2_ref[...])


def _mlp_fuse(feat1, feat2, params):
    w1, b1, w2, b2 = params
    n = feat1.size
    hidden = w1.shape[1]
    assert w1.shape == (2 * n, hidden) and w2.shape == (hidden, n)
    assert b1.shape == (hidden,) and b2.shape == (n,)

    # ---- stage 1: h = relu(x @ W1 + b1),  x = concat(f1, f2)  (K-tiled) ----
    x = jnp.concatenate([feat1.reshape(-1), feat2.reshape(-1)]).astype(jnp.bfloat16)
    K = 2 * n
    tk, nk, k_pad = _pick_tile(K, _TK_TARGET, 128)
    w1c = w1.astype(jnp.bfloat16)
    if k_pad != K:                      # zero rows/cols contribute nothing -> exact
        x = jnp.pad(x, (0, k_pad - K))
        w1c = jnp.pad(w1c, ((0, k_pad - K), (0, 0)))
    x = x.reshape(1, k_pad)
    b1r = b1.reshape(1, hidden).astype(jnp.float32)

    h = pl.pallas_call(
        _mlp_hidden_kernel,
        out_shape=jax.ShapeDtypeStruct((1, hidden), jnp.bfloat16),
        grid_spec=pltpu.PrefetchScalarGridSpec(
            num_scalar_prefetch=0,
            grid=(nk,),
            in_specs=[
                pl.BlockSpec((1, tk), lambda k: (0, k)),        # x chunk
                pl.BlockSpec((tk, hidden), lambda k: (k, 0)),   # W1 chunk (streamed)
                pl.BlockSpec((1, hidden), lambda k: (0, 0)),    # b1 (tiny, resident)
            ],
            out_specs=pl.BlockSpec((1, hidden), lambda k: (0, 0)),
            scratch_shapes=[pltpu.VMEM((1, hidden), jnp.float32)],
        ),
        compiler_params=pltpu.CompilerParams(
            dimension_semantics=("arbitrary",)),
    )(x, w1c, b1r)

    # ---- stage 2: y = tanh(h @ W2 + b2)  (N-tiled; W2 streamed, not resident) ----
    tn, nt, n_pad = _pick_tile(n, _TN_TARGET, 128)
    w2c = w2.astype(jnp.bfloat16)
    b2r = b2.reshape(1, n).astype(jnp.float32)
    if n_pad != n:
        w2c = jnp.pad(w2c, ((0, 0), (0, n_pad - n)))
        b2r = jnp.pad(b2r, ((0, 0), (0, n_pad - n)))

    out = pl.pallas_call(
        _mlp_out_kernel,
        out_shape=jax.ShapeDtypeStruct((1, n_pad), jnp.float32),
        grid_spec=pltpu.PrefetchScalarGridSpec(
            num_scalar_prefetch=0,
            grid=(nt,),
            in_specs=[
                pl.BlockSpec((1, hidden), lambda j: (0, 0)),    # h (tiny, resident)
                pl.BlockSpec((hidden, tn), lambda j: (0, j)),   # W2 chunk (streamed)
                pl.BlockSpec((1, tn), lambda j: (0, j)),        # b2 chunk
            ],
            out_specs=pl.BlockSpec((1, tn), lambda j: (0, j)),
        ),
        compiler_params=pltpu.CompilerParams(
            dimension_semantics=("parallel",)),
    )(h, w2c, b2r)

    return out[0, :n].reshape(feat1.shape)


# ----------------------------------------------------------------------------
# Parameter init (deterministic, mimics nn.Linear default: U(-1/sqrt(fan_in), +))
# ----------------------------------------------------------------------------
def init_mlp_params(key, feat_shape, hidden=128, dtype=jnp.float32):
    n = 1
    for d in feat_shape:
        n *= d
    k1, k2, k3, k4 = jax.random.split(key, 4)
    lim1 = 1.0 / jnp.sqrt(2.0 * n)
    lim2 = 1.0 / jnp.sqrt(float(hidden))
    w1 = jax.random.uniform(k1, (2 * n, hidden), dtype, -lim1, lim1)
    b1 = jax.random.uniform(k2, (hidden,), dtype, -lim1, lim1)
    w2 = jax.random.uniform(k3, (hidden, n), dtype, -lim2, lim2)
    b2 = jax.random.uniform(k4, (n,), dtype, -lim2, lim2)
    return (w1, b1, w2, b2)


# ----------------------------------------------------------------------------
# Public wrapper — mirrors FeatureFusion.forward
# ----------------------------------------------------------------------------
def feature_fusion(feat1, feat2, mode='sum', mlp_params=None):
    if mode == 'sum':
        return _elementwise_fuse(feat1, feat2, None)
    elif mode == 'mean':
        return _elementwise_fuse(feat1, feat2, 0.5)
    elif mode == 'mlp':
        assert mlp_params is not None
        return _mlp_fuse(feat1, feat2, mlp_params)
    elif mode == 'cnn':
        # TODO(synk): reference 'cnn' branch is shape-inconsistent (Conv2d in_channels=2
        # vs. a channel dim of 1 after permute/unsqueeze); not reproducible.
        raise NotImplementedError("cnn mode is ill-formed in the reference module")
    else:
        raise ValueError('Invalid mode')


if __name__ == "__main__":
    key = jax.random.PRNGKey(0)
    k1, k2, kp = jax.random.split(key, 3)

    B, C, T = 2, 4, 16  # feature shape (dim0, dim1, dim2), same as PyTorch 3-D features
    feat1 = jax.random.normal(k1, (B, C, T), dtype=jnp.float32)
    feat2 = jax.random.normal(k2, (B, C, T), dtype=jnp.float32)

    # mode='sum' (module default)
    out_sum = feature_fusion(feat1, feat2, mode='sum')
    jax.block_until_ready(out_sum)
    assert jnp.allclose(out_sum, feat1 + feat2, atol=1e-6)

    # mode='mean'
    out_mean = feature_fusion(feat1, feat2, mode='mean')
    jax.block_until_ready(out_mean)
    assert jnp.allclose(out_mean, (feat1 + feat2) / 2, atol=1e-6)

    # non-128-multiple shape exercises the pad-to-lane-dense + slice path
    g1 = jax.random.normal(k1, (2, 3, 5), dtype=jnp.float32)
    g2 = jax.random.normal(k2, (2, 3, 5), dtype=jnp.float32)
    out_f = feature_fusion(g1, g2, mode='sum')
    jax.block_until_ready(out_f)
    assert jnp.allclose(out_f, g1 + g2, atol=1e-6)

    # Pure-JAX reference matching the kernel's bf16-weight / f32-accumulate numerics.
    def mlp_ref(f1, f2, params):
        w1, b1, w2, b2 = params
        x = jnp.concatenate([f1.reshape(-1), f2.reshape(-1)]).reshape(1, -1)
        x = x.astype(jnp.bfloat16)
        w1c = w1.astype(jnp.bfloat16)
        w2c = w2.astype(jnp.bfloat16)
        h = jnp.maximum(
            jnp.dot(x, w1c, preferred_element_type=jnp.float32) + b1, 0.0)
        y = jnp.tanh(
            jnp.dot(h.astype(jnp.bfloat16), w2c,
                    preferred_element_type=jnp.float32) + b2)
        return y.reshape(f1.shape)

    # mode='mlp' (fresh deterministic weights, like the module creates per-forward)
    params = init_mlp_params(kp, (B, C, T), hidden=128)
    out_mlp = feature_fusion(feat1, feat2, mode='mlp', mlp_params=params)
    jax.block_until_ready(out_mlp)
    assert out_mlp.shape == feat1.shape
    assert jnp.allclose(out_mlp, mlp_ref(feat1, feat2, params), atol=5e-3)

    # mlp with a non-128-multiple feature count exercises the K/N padding paths
    params_g = init_mlp_params(kp, (2, 3, 5), hidden=128)
    out_mlp_g = feature_fusion(g1, g2, mode='mlp', mlp_params=params_g)
    jax.block_until_ready(out_mlp_g)
    assert out_mlp_g.shape == g1.shape
    assert jnp.allclose(out_mlp_g, mlp_ref(g1, g2, params_g), atol=5e-3)

    print("KERNEL_OK")
</pallas_src>

<mosaic_0001>
module attributes {stable_mosaic.version = 11 : i64} {
  func.func @kernel(%arg0: i32, %arg1: memref<1x128xf32, #tpu.memory_space<vmem>>, %arg2: memref<1x128xf32, #tpu.memory_space<vmem>>, %arg3: memref<1x128xf32, #tpu.memory_space<vmem>>) attributes {dimension_semantics = [#tpu.dimension_semantics<parallel>], iteration_bounds = array<i64: 1>, scalar_prefetch = 0 : i64, scratch_operands = 0 : i64, tpu.core_type = #tpu.core_type<tc>, window_params = [{transform_indices = @transform_0, window_bounds = array<i64: 1, 128>}, {transform_indices = @transform_1, window_bounds = array<i64: 1, 128>}, {transform_indices = @transform_2, window_bounds = array<i64: 1, 128>}]} {
    %c0 = arith.constant 0 : index
    %c0_0 = arith.constant 0 : index
    %0 = vector.load %arg1[%c0, %c0_0] : memref<1x128xf32, #tpu.memory_space<vmem>>, vector<1x128xf32>
    %c0_1 = arith.constant 0 : index
    %c0_2 = arith.constant 0 : index
    %1 = vector.load %arg2[%c0_1, %c0_2] : memref<1x128xf32, #tpu.memory_space<vmem>>, vector<1x128xf32>
    %2 = arith.addf %0, %1 : vector<1x128xf32>
    %c0_3 = arith.constant 0 : index
    %c0_4 = arith.constant 0 : index
    %3 = vector.load %arg3[%c0_3, %c0_4] : memref<1x128xf32, #tpu.memory_space<vmem>>, vector<1x128xf32>
    tpu.vector_store %arg3[%c0_3, %c0_4], %2 {strides = array<i32>} : memref<1x128xf32, #tpu.memory_space<vmem>>, vector<1x128xf32>,
    return
  }
  func.func @transform_0(%arg0: i32) -> (i32, i32) {
    %c0_i32 = arith.constant 0 : i32
    %c0_i32_0 = arith.constant 0 : i32
    return %arg0, %c0_i32 : i32, i32
  }
  func.func @transform_1(%arg0: i32) -> (i32, i32) {
    %c0_i32 = arith.constant 0 : i32
    %c0_i32_0 = arith.constant 0 : i32
    return %arg0, %c0_i32 : i32, i32
  }
  func.func @transform_2(%arg0: i32) -> (i32, i32) {
    %c0_i32 = arith.constant 0 : i32
    %c0_i32_0 = arith.constant 0 : i32
    return %arg0, %c0_i32 : i32, i32
  }
}

</mosaic_0001>

<llo_original>
// kernel: tpu_custom_call.1
$region0: #{tpu_custom_call.1}
  #allocation0 [shape = 'u32[]', space=smem, size = 0x4, offset = 0x4, fixed_abs, tag = 'smem constant byte address 0x4 - core index']
  #allocation1 [shape = 'u32[144,128]{1,0:T(1,128)}', space=vmem, size = 0x12000, scoped, tag = 'internal scratch']
  %s0 = inlined_call_operand.hbm [shape: f32[1,128], index: 0, kind: input, shape index: {}]
  %s1 = inlined_call_operand.vmem [shape: f32[1,128], index: 1, kind: input, shape index: {}]
  %s2 = inlined_call_operand.hbm [shape: f32[1,128], index: 2, kind: output, shape index: {}]
  %s3 = sld [smem:[#allocation0]]
  $region22: #{tpu_custom_call.1} parent=0
    _
  %s5 = ssub.s32 1, %s3
  %s6 = scalar_select 0, %s5, %s3
  $region1: #{tpu_custom_call.1} parent=0
    #allocation2 [shape = 'u8[512]{0}', space=vmem, size = 0x400, scoped, tag = 'input window, operand 0, single buffered']
    #allocation3 [shape = 's32[1]{0}', space=sflag, size = 0x4, scoped, tag = 'scoped memory for tpu_custom_call.1']
    #allocation4 [shape = 's32[1]{0}', space=sflag, size = 0x4, scoped, tag = 'scoped memory for tpu_custom_call.1']
    #allocation5 [shape = 'u8[512]{0}', space=vmem, size = 0x400, scoped, tag = 'output window, operand 0, single buffered']
    %7 = vsyncpa [#allocation3], 0
    %8 = vsyncpa [#allocation4], 0
    // Predicated region
    $region2: #{tpu_custom_call.1} parent=1 // pred_check
      _
    $region3: #{tpu_custom_call.1} parent=1 // pred_check_branch
      %10 = sbr.rel (0) target = $region5
    $region4: #{tpu_custom_call.1} parent=1 // pred_region
      %s12 = ssub.s32 16, 16
      %13 = vsyncadd [#allocation3], %s12
      %s15 = sshll.u32 [#allocation2], 4
      %s16 = int_to_ptr.vmem [resolvable:$true] %s15
      %18 = dma.hbm_to_vmem [thread:$0]  %s0, 16, %s16, [#allocation3]
    $region5: #{tpu_custom_call.1} parent=1 // pred_fallthru
      _
    // Predicated region
    $region6: #{tpu_custom_call.1} parent=1 // pred_check
      _
    $region7: #{tpu_custom_call.1} parent=1 // pred_check_branch
      %20 = sbr.rel (0) target = $region9
    $region8: #{tpu_custom_call.1} parent=1 // pred_region
      _
    $region9: #{tpu_custom_call.1} parent=1 // pred_fallthru
      _
    // Predicated region
    $region10: #{tpu_custom_call.1} parent=1 // pred_check
      _
    $region11: #{tpu_custom_call.1} parent=1 // pred_check_branch
      %22 = sbr.rel (0) target = $region13
    $region12: #{tpu_custom_call.1} parent=1 // pred_region
      %23 = dma.done [#allocation3], 16
    $region13: #{tpu_custom_call.1} parent=1 // pred_fallthru
      _
    %v24 = vld [vmem:[#allocation2] sm:$0x1]
    %v25 = vld [vmem:[%s1] sm:$0x1]
    %v26 = vadd.f32 %v24, %v25
    %27 = vst [vmem:[#allocation5] sm:$0x1] %v26
    // Predicated region
    $region14: #{tpu_custom_call.1} parent=1 // pred_check
      _
    $region15: #{tpu_custom_call.1} parent=1 // pred_check_branch
      %29 = sbr.rel (0) target = $region17
    $region16: #{tpu_custom_call.1} parent=1 // pred_region
      %s31 = ssub.s32 16, 16
      %32 = vsyncadd [#allocation4], %s31
      %s34 = sshll.u32 [#allocation5], 4
      %s35 = int_to_ptr.vmem [resolvable:$true] %s34
      %37 = dma.vmem_to_hbm [thread:$0]  %s35, 16, %s2, [#allocation4]
    $region17: #{tpu_custom_call.1} parent=1 // pred_fallthru
      _
    // Predicated region
    $region18: #{tpu_custom_call.1} parent=1 // pred_check
      _
    $region19: #{tpu_custom_call.1} parent=1 // pred_check_branch
      %39 = sbr.rel (0) target = $region21
    $region20: #{tpu_custom_call.1} parent=1 // pred_region
      %40 = dma.done [#allocation4], 16
    $region21: #{tpu_custom_call.1} parent=1 // pred_fallthru
      _
    %41 = vsyncpa [#allocation3], 1
    %42 = vsyncpa [#allocation4], 1

</llo_original>
